<compile_context>
chip_gen: v7x
topology: tpu7x:2x2x1
jax: 0.10.0
libtpu: 0.0.40
codegen_flags: <defaults>
</compile_context>

<pallas_src>
import jax
import jax.numpy as jnp
from jax.experimental import pallas as pl
from jax.experimental.pallas import tpu as pltpu

LN_EPS = 1e-5  # nn.LayerNorm default


def _round_up(x, m):
    return ((x + m - 1) // m) * m


def _wproj_kernel(ids_ref, ent_ref, w3_ref, bias_ref, gamma_ref, beta_ref, out_ref):
    # Blocks (one batch tile per grid step):
    #   ids_ref  : (TB, 1)        int32 relation ids
    #   ent_ref  : (TB, E)        flattened ("distributed"-order) entity embeddings
    #   w3_ref   : (3E, R*E) bf16 fused block-diag transforms, [W_hi; W_lo; W_hi]
    #   bias_ref : (R, E)         flattened relation biases (VMEM-resident)
    #   gamma/beta: (1, E)        LayerNorm affine
    #   out_ref  : (TB, E)
    e = ent_ref[...]                                    # (TB, E) f32
    ids = ids_ref[...]                                  # (TB, 1) i32

    # bf16x3 operand split (VPU) -> Precision.HIGH-class accuracy with
    # single-pass bf16 MXU matmuls only.
    e_hi = e.astype(jnp.bfloat16)
    e_lo = (e - e_hi.astype(jnp.float32)).astype(jnp.bfloat16)
    e3 = jnp.concatenate([e_hi, e_hi, e_lo], axis=-1)   # (TB, 3E) bf16

    # One wide MXU dot covering all relations and all 3 precision passes:
    #   e_hi@W_hi + e_hi@W_lo + e_lo@W_hi, accumulated in f32.
    xall = jnp.dot(e3, w3_ref[...],
                   preferred_element_type=jnp.float32)  # (TB, R*E) f32

    # Relation select + bias on the VPU (exact one-hot masks from the ids).
    n_rel, E = bias_ref.shape
    x = jnp.zeros_like(e)
    for r in range(n_rel):
        m = (ids == r).astype(jnp.float32)              # (TB, 1)
        x = x + m * (xall[:, r * E:(r + 1) * E] + bias_ref[r:r + 1, :])

    # LayerNorm over the feature (lane) axis, per row (biased variance).
    mean = jnp.mean(x, axis=-1, keepdims=True)
    xc = x - mean
    var = jnp.mean(xc * xc, axis=-1, keepdims=True)
    inv = jax.lax.rsqrt(var + LN_EPS)                   # EUP slot
    out_ref[...] = (xc * inv * gamma_ref[...] + beta_ref[...]).astype(out_ref.dtype)


def wasserstein_projection_diag(ent_emb, proj_ids, relation_tran, relation_bias,
                                ln_gamma, ln_beta, *, ent_grid, ent_dim,
                                block_b=512):
    B, emb_dim = ent_emb.shape
    D, G = ent_dim, ent_grid
    E = D * G
    assert emb_dim == E
    R = relation_tran.shape[0]

    # --- wrapper preprocessing (plain XLA, tiny tensors) -----------------------
    # Block-diagonal, transposed transforms so that x_flat = e_flat @ W[r]:
    #   W[r, d*G + j, e*G + i] = relation_tran[r, d, i, j] * (d == e)
    eye = jnp.eye(D, dtype=jnp.float32)
    W = jnp.einsum("rdij,de->rdjei",
                   relation_tran.astype(jnp.float32), eye).reshape(R, E, E)
    # Fuse the R per-relation matmuls into one wide (E, R*E) operand.
    W_cat = jnp.transpose(W, (1, 0, 2)).reshape(E, R * E)
    # bf16 hi/lo split of the weights (zeros stay exactly zero).
    W_hi = W_cat.astype(jnp.bfloat16)
    W_lo = (W_cat - W_hi.astype(jnp.float32)).astype(jnp.bfloat16)
    W3 = jnp.concatenate([W_hi, W_lo, W_hi], axis=0)            # (3E, R*E) bf16

    bias_flat = relation_bias.astype(jnp.float32).reshape(R, E)
    gamma2d = ln_gamma.astype(jnp.float32).reshape(1, E)
    beta2d = ln_beta.astype(jnp.float32).reshape(1, E)
    ids2d = proj_ids.astype(jnp.int32).reshape(B, 1)
    ent = ent_emb.astype(jnp.float32)

    # --- batch tiling -----------------------------------------------------------
    # Big tiles amortize per-grid-step overhead (~0.35 us), but keep >= 2 grid
    # steps when B allows it so v7x's two TensorCores both get work.  TB is
    # always a multiple of 8 (sublane rule); the ragged last tile is handled by
    # Pallas' bounded DMAs (no wrapper-side jnp.pad copy of the entity stream).
    tb_cap = _round_up(pl.cdiv(B, 2), 8) if B > 8 else 8
    TB = max(8, _round_up(min(block_b, tb_cap), 8))
    grid = (pl.cdiv(B, TB),)

    cost = pl.CostEstimate(
        flops=2 * B * (3 * E) * (R * E) + 12 * B * E,
        transcendentals=B,
        bytes_accessed=2 * B * E * 4 + B * 4 + 3 * E * R * E * 2 + R * E * 4 + 2 * E * 4,
    )

    out = pl.pallas_call(
        _wproj_kernel,
        out_shape=jax.ShapeDtypeStruct((B, E), jnp.float32),
        grid=grid,
        in_specs=[
            pl.BlockSpec((TB, 1), lambda i: (i, 0)),            # relation ids
            pl.BlockSpec((TB, E), lambda i: (i, 0)),            # entity tile
            pl.BlockSpec((3 * E, R * E), lambda i: (0, 0)),     # fused transforms (resident)
            pl.BlockSpec((R, E), lambda i: (0, 0)),             # bias table (resident)
            pl.BlockSpec((1, E), lambda i: (0, 0)),             # LN gamma
            pl.BlockSpec((1, E), lambda i: (0, 0)),             # LN beta
        ],
        out_specs=pl.BlockSpec((TB, E), lambda i: (i, 0)),
        compiler_params=pltpu.CompilerParams(
            dimension_semantics=("parallel",)),                 # shard batch tiles across TCs
        cost_estimate=cost,
    )(ids2d, ent, W3, bias_flat, gamma2d, beta2d)

    return out


def _reference(ent_emb, proj_ids, relation_tran, relation_bias, ln_gamma, ln_beta,
               *, ent_grid, ent_dim):
    B = ent_emb.shape[0]
    D, G = ent_dim, ent_grid
    e = ent_emb.reshape(B, D, G)
    T = relation_tran[proj_ids]
    rb = relation_bias[proj_ids]
    x = jnp.einsum("bdij,bdj->bdi", T, e,
                   precision=jax.lax.Precision.HIGHEST) + rb
    xf = x.reshape(B, D * G)
    mean = xf.mean(-1, keepdims=True)
    var = ((xf - mean) ** 2).mean(-1, keepdims=True)
    return (xf - mean) / jnp.sqrt(var + LN_EPS) * ln_gamma + ln_beta


def _xavier_uniform(key, shape):
    if len(shape) > 2:
        rec = 1
        for s in shape[2:]:
            rec *= s
        fan_in, fan_out = shape[1] * rec, shape[0] * rec
    else:
        fan_in, fan_out = shape[1], shape[0]
    bound = (6.0 / (fan_in + fan_out)) ** 0.5
    return jax.random.uniform(key, shape, jnp.float32, -bound, bound)


if __name__ == "__main__":
    ent_grid, ent_dim = 8, 16       # emb_dim = 128 -> lane-dense
    n_relation = 6
    batch = 8
    emb_dim = ent_grid * ent_dim

    key = jax.random.PRNGKey(0)
    k_tran, k_bias, k_emb, k_ids, k_emb2, k_ids2 = jax.random.split(key, 6)

    relation_tran = _xavier_uniform(k_tran, (n_relation, ent_dim, ent_grid, ent_grid))
    relation_bias = _xavier_uniform(k_bias, (n_relation, ent_dim, ent_grid))
    ln_gamma = jnp.ones((emb_dim,), jnp.float32)   # nn.LayerNorm default weight
    ln_beta = jnp.zeros((emb_dim,), jnp.float32)   # nn.LayerNorm default bias

    ent_emb = jax.random.normal(k_emb, (batch, emb_dim), jnp.float32)
    proj_ids = jax.random.randint(k_ids, (batch,), 0, n_relation, jnp.int32)

    out = wasserstein_projection_diag(
        ent_emb, proj_ids, relation_tran, relation_bias, ln_gamma, ln_beta,
        ent_grid=ent_grid, ent_dim=ent_dim)
    out = jax.block_until_ready(out)

    ref = _reference(ent_emb, proj_ids, relation_tran, relation_bias, ln_gamma,
                     ln_beta, ent_grid=ent_grid, ent_dim=ent_dim)
    assert out.shape == (batch, emb_dim)
    assert jnp.allclose(out, ref, atol=2e-4, rtol=2e-4), "mismatch vs reference"

    # Second case: batch not a multiple of the tile -> exercises the ragged last
    # block (bounded DMAs) and a multi-step grid (block_b=8, B=19 -> grid=(3,)).
    b2 = 19
    ent2 = jax.random.normal(k_emb2, (b2, emb_dim), jnp.float32)
    ids2 = jax.random.randint(k_ids2, (b2,), 0, n_relation, jnp.int32)
    out2 = jax.block_until_ready(wasserstein_projection_diag(
        ent2, ids2, relation_tran, relation_bias, ln_gamma, ln_beta,
        ent_grid=ent_grid, ent_dim=ent_dim, block_b=8))
    ref2 = _reference(ent2, ids2, relation_tran, relation_bias, ln_gamma, ln_beta,
                      ent_grid=ent_grid, ent_dim=ent_dim)
    assert out2.shape == (b2, emb_dim)
    assert jnp.allclose(out2, ref2, atol=2e-4, rtol=2e-4), "mismatch vs reference (ragged batch)"

    print("KERNEL_OK")
</pallas_src>

<mosaic_0001>
module attributes {stable_mosaic.version = 11 : i64} {
  func.func @_wproj_kernel(%arg0: i32, %arg1: memref<8x1xi32, #tpu.memory_space<vmem>>, %arg2: memref<8x128xf32, #tpu.memory_space<vmem>>, %arg3: memref<384x768xbf16, #tpu.memory_space<vmem>>, %arg4: memref<6x128xf32, #tpu.memory_space<vmem>>, %arg5: memref<1x128xf32, #tpu.memory_space<vmem>>, %arg6: memref<1x128xf32, #tpu.memory_space<vmem>>, %arg7: memref<8x128xf32, #tpu.memory_space<vmem>>) attributes {dimension_semantics = [#tpu.dimension_semantics<parallel>], iteration_bounds = array<i64: 1>, scalar_prefetch = 0 : i64, scratch_operands = 0 : i64, tpu.core_type = #tpu.core_type<tc>, window_params = [{transform_indices = @transform_0, window_bounds = array<i64: 8, 1>}, {transform_indices = @transform_1, window_bounds = array<i64: 8, 128>}, {pipeline_mode = #tpu.pipeline_mode<synchronous>, transform_indices = @transform_2, window_bounds = array<i64: 384, 768>}, {pipeline_mode = #tpu.pipeline_mode<synchronous>, transform_indices = @transform_3, window_bounds = array<i64: 6, 128>}, {pipeline_mode = #tpu.pipeline_mode<synchronous>, transform_indices = @transform_4, window_bounds = array<i64: 1, 128>}, {pipeline_mode = #tpu.pipeline_mode<synchronous>, transform_indices = @transform_5, window_bounds = array<i64: 1, 128>}, {transform_indices = @transform_6, window_bounds = array<i64: 8, 128>}]} {
    %c0 = arith.constant 0 : index
    %c0_0 = arith.constant 0 : index
    %0 = vector.load %arg2[%c0, %c0_0] : memref<8x128xf32, #tpu.memory_space<vmem>>, vector<8x128xf32>
    %c0_1 = arith.constant 0 : index
    %c0_2 = arith.constant 0 : index
    %1 = vector.load %arg1[%c0_1, %c0_2] : memref<8x1xi32, #tpu.memory_space<vmem>>, vector<8x1xi32>
    %2 = arith.truncf %0 : vector<8x128xf32> to vector<8x128xbf16>
    %3 = arith.extf %2 : vector<8x128xbf16> to vector<8x128xf32>
    %4 = arith.subf %0, %3 : vector<8x128xf32>
    %5 = arith.truncf %4 : vector<8x128xf32> to vector<8x128xbf16>
    %6 = tpu.concatenate %2, %2, %5 in 1 : vector<8x128xbf16>, vector<8x128xbf16>, vector<8x128xbf16> -> vector<8x384xbf16>
    %c0_3 = arith.constant 0 : index
    %c0_4 = arith.constant 0 : index
    %7 = vector.load %arg3[%c0_3, %c0_4] : memref<384x768xbf16, #tpu.memory_space<vmem>>, vector<384x768xbf16>
    %cst = arith.constant dense<0.000000e+00> : vector<8x768xf32>
    %8 = tpu.matmul %6, %7, %cst {dimension_numbers = #tpu.dot_dimension_numbers<[1], [0], [0], [1], [0, 0, 1, 1], [], []>} : vector<8x384xbf16>, vector<384x768xbf16>, vector<8x768xf32> -> vector<8x768xf32>
    %cst_5 = arith.constant 0.000000e+00 : f32
    %9 = vector.broadcast %cst_5 : f32 to vector<8x128xf32>
    %c0_i32 = arith.constant 0 : i32
    %10 = vector.broadcast %c0_i32 : i32 to vector<8x1xi32>
    %11 = arith.cmpi eq, %1, %10 : vector<8x1xi32>
    %12 = arith.extui %11 : vector<8x1xi1> to vector<8x1xi32>
    %13 = arith.sitofp %12 : vector<8x1xi32> to vector<8x1xf32>
    %14 = vector.extract_strided_slice %8 {offsets = [0, 0], sizes = [8, 128], strides = [1, 1]} : vector<8x768xf32> to vector<8x128xf32>
    %c0_6 = arith.constant 0 : index
    %c0_7 = arith.constant 0 : index
    %15 = vector.load %arg4[%c0_6, %c0_7] : memref<6x128xf32, #tpu.memory_space<vmem>>, vector<1x128xf32>
    %16 = vector.broadcast %15 : vector<1x128xf32> to vector<8x128xf32>
    %17 = arith.addf %14, %16 : vector<8x128xf32>
    %18 = vector.broadcast %13 : vector<8x1xf32> to vector<8x128xf32>
    %19 = arith.mulf %18, %17 : vector<8x128xf32>
    %20 = arith.addf %9, %19 : vector<8x128xf32>
    %c1_i32 = arith.constant 1 : i32
    %21 = vector.broadcast %c1_i32 : i32 to vector<8x1xi32>
    %22 = arith.cmpi eq, %1, %21 : vector<8x1xi32>
    %23 = arith.extui %22 : vector<8x1xi1> to vector<8x1xi32>
    %24 = arith.sitofp %23 : vector<8x1xi32> to vector<8x1xf32>
    %25 = vector.extract_strided_slice %8 {offsets = [0, 128], sizes = [8, 128], strides = [1, 1]} : vector<8x768xf32> to vector<8x128xf32>
    %c1 = arith.constant 1 : index
    %c0_8 = arith.constant 0 : index
    %26 = vector.load %arg4[%c1, %c0_8] : memref<6x128xf32, #tpu.memory_space<vmem>>, vector<1x128xf32>
    %27 = vector.broadcast %26 : vector<1x128xf32> to vector<8x128xf32>
    %28 = arith.addf %25, %27 : vector<8x128xf32>
    %29 = vector.broadcast %24 : vector<8x1xf32> to vector<8x128xf32>
    %30 = arith.mulf %29, %28 : vector<8x128xf32>
    %31 = arith.addf %20, %30 : vector<8x128xf32>
    %c2_i32 = arith.constant 2 : i32
    %32 = vector.broadcast %c2_i32 : i32 to vector<8x1xi32>
    %33 = arith.cmpi eq, %1, %32 : vector<8x1xi32>
    %34 = arith.extui %33 : vector<8x1xi1> to vector<8x1xi32>
    %35 = arith.sitofp %34 : vector<8x1xi32> to vector<8x1xf32>
    %36 = vector.extract_strided_slice %8 {offsets = [0, 256], sizes = [8, 128], strides = [1, 1]} : vector<8x768xf32> to vector<8x128xf32>
    %c2 = arith.constant 2 : index
    %c0_9 = arith.constant 0 : index
    %37 = vector.load %arg4[%c2, %c0_9] : memref<6x128xf32, #tpu.memory_space<vmem>>, vector<1x128xf32>
    %38 = vector.broadcast %37 : vector<1x128xf32> to vector<8x128xf32>
    %39 = arith.addf %36, %38 : vector<8x128xf32>
    %40 = vector.broadcast %35 : vector<8x1xf32> to vector<8x128xf32>
    %41 = arith.mulf %40, %39 : vector<8x128xf32>
    %42 = arith.addf %31, %41 : vector<8x128xf32>
    %c3_i32 = arith.constant 3 : i32
    %43 = vector.broadcast %c3_i32 : i32 to vector<8x1xi32>
    %44 = arith.cmpi eq, %1, %43 : vector<8x1xi32>
    %45 = arith.extui %44 : vector<8x1xi1> to vector<8x1xi32>
    %46 = arith.sitofp %45 : vector<8x1xi32> to vector<8x1xf32>
    %47 = vector.extract_strided_slice %8 {offsets = [0, 384], sizes = [8, 128], strides = [1, 1]} : vector<8x768xf32> to vector<8x128xf32>
    %c3 = arith.constant 3 : index
    %c0_10 = arith.constant 0 : index
    %48 = vector.load %arg4[%c3, %c0_10] : memref<6x128xf32, #tpu.memory_space<vmem>>, vector<1x128xf32>
    %49 = vector.broadcast %48 : vector<1x128xf32> to vector<8x128xf32>
    %50 = arith.addf %47, %49 : vector<8x128xf32>
    %51 = vector.broadcast %46 : vector<8x1xf32> to vector<8x128xf32>
    %52 = arith.mulf %51, %50 : vector<8x128xf32>
    %53 = arith.addf %42, %52 : vector<8x128xf32>
    %c4_i32 = arith.constant 4 : i32
    %54 = vector.broadcast %c4_i32 : i32 to vector<8x1xi32>
    %55 = arith.cmpi eq, %1, %54 : vector<8x1xi32>
    %56 = arith.extui %55 : vector<8x1xi1> to vector<8x1xi32>
    %57 = arith.sitofp %56 : vector<8x1xi32> to vector<8x1xf32>
    %58 = vector.extract_strided_slice %8 {offsets = [0, 512], sizes = [8, 128], strides = [1, 1]} : vector<8x768xf32> to vector<8x128xf32>
    %c4 = arith.constant 4 : index
    %c0_11 = arith.constant 0 : index
    %59 = vector.load %arg4[%c4, %c0_11] : memref<6x128xf32, #tpu.memory_space<vmem>>, vector<1x128xf32>
    %60 = vector.broadcast %59 : vector<1x128xf32> to vector<8x128xf32>
    %61 = arith.addf %58, %60 : vector<8x128xf32>
    %62 = vector.broadcast %57 : vector<8x1xf32> to vector<8x128xf32>
    %63 = arith.mulf %62, %61 : vector<8x128xf32>
    %64 = arith.addf %53, %63 : vector<8x128xf32>
    %c5_i32 = arith.constant 5 : i32
    %65 = vector.broadcast %c5_i32 : i32 to vector<8x1xi32>
    %66 = arith.cmpi eq, %1, %65 : vector<8x1xi32>
    %67 = arith.extui %66 : vector<8x1xi1> to vector<8x1xi32>
    %68 = arith.sitofp %67 : vector<8x1xi32> to vector<8x1xf32>
    %69 = vector.extract_strided_slice %8 {offsets = [0, 640], sizes = [8, 128], strides = [1, 1]} : vector<8x768xf32> to vector<8x128xf32>
    %c5 = arith.constant 5 : index
    %c0_12 = arith.constant 0 : index
    %70 = vector.load %arg4[%c5, %c0_12] : memref<6x128xf32, #tpu.memory_space<vmem>>, vector<1x128xf32>
    %71 = vector.broadcast %70 : vector<1x128xf32> to vector<8x128xf32>
    %72 = arith.addf %69, %71 : vector<8x128xf32>
    %73 = vector.broadcast %68 : vector<8x1xf32> to vector<8x128xf32>
    %74 = arith.mulf %73, %72 : vector<8x128xf32>
    %75 = arith.addf %64, %74 : vector<8x128xf32>
    %cst_13 = arith.constant dense<0.000000e+00> : vector<8xf32>
    %76 = vector.multi_reduction <add>, %75, %cst_13 [1] : vector<8x128xf32> to vector<8xf32>
    %77 = vector.shape_cast %76 : vector<8xf32> to vector<8x1xf32>
    %cst_14 = arith.constant 1.280000e+02 : f32
    %78 = vector.broadcast %cst_14 : f32 to vector<8x1xf32>
    %79 = arith.divf %77, %78 : vector<8x1xf32>
    %80 = vector.broadcast %79 : vector<8x1xf32> to vector<8x128xf32>
    %81 = arith.subf %75, %80 : vector<8x128xf32>
    %82 = arith.mulf %81, %81 : vector<8x128xf32>
    %cst_15 = arith.constant dense<0.000000e+00> : vector<8xf32>
    %83 = vector.multi_reduction <add>, %82, %cst_15 [1] : vector<8x128xf32> to vector<8xf32>
    %84 = vector.shape_cast %83 : vector<8xf32> to vector<8x1xf32>
    %cst_16 = arith.constant 1.280000e+02 : f32
    %85 = vector.broadcast %cst_16 : f32 to vector<8x1xf32>
    %86 = arith.divf %84, %85 : vector<8x1xf32>
    %cst_17 = arith.constant 9.99999974E-6 : f32
    %87 = vector.broadcast %cst_17 : f32 to vector<8x1xf32>
    %88 = arith.addf %86, %87 : vector<8x1xf32>
    %89 = math.rsqrt %88 : vector<8x1xf32>
    %90 = vector.broadcast %89 : vector<8x1xf32> to vector<8x128xf32>
    %91 = arith.mulf %81, %90 : vector<8x128xf32>
    %c0_18 = arith.constant 0 : index
    %c0_19 = arith.constant 0 : index
    %92 = vector.load %arg5[%c0_18, %c0_19] : memref<1x128xf32, #tpu.memory_space<vmem>>, vector<1x128xf32>
    %93 = vector.broadcast %92 : vector<1x128xf32> to vector<8x128xf32>
    %94 = arith.mulf %91, %93 : vector<8x128xf32>
    %c0_20 = arith.constant 0 : index
    %c0_21 = arith.constant 0 : index
    %95 = vector.load %arg6[%c0_20, %c0_21] : memref<1x128xf32, #tpu.memory_space<vmem>>, vector<1x128xf32>
    %96 = vector.broadcast %95 : vector<1x128xf32> to vector<8x128xf32>
    %97 = arith.addf %94, %96 : vector<8x128xf32>
    %c0_22 = arith.constant 0 : index
    %c0_23 = arith.constant 0 : index
    %98 = vector.load %arg7[%c0_22, %c0_23] : memref<8x128xf32, #tpu.memory_space<vmem>>, vector<8x128xf32>
    tpu.vector_store %arg7[%c0_22, %c0_23], %97 {strides = array<i32>} : memref<8x128xf32, #tpu.memory_space<vmem>>, vector<8x128xf32>,
    return
  }
  func.func @transform_0(%arg0: i32) -> (i32, i32) {
    %c0_i32 = arith.constant 0 : i32
    %c0_i32_0 = arith.constant 0 : i32
    return %arg0, %c0_i32 : i32, i32
  }
  func.func @transform_1(%arg0: i32) -> (i32, i32) {
    %c0_i32 = arith.constant 0 : i32
    %c0_i32_0 = arith.constant 0 : i32
    return %arg0, %c0_i32 : i32, i32
  }
  func.func @transform_2(%arg0: i32) -> (i32, i32) {
    %c0_i32 = arith.constant 0 : i32
    %c0_i32_0 = arith.constant 0 : i32
    %c0_i32_1 = arith.constant 0 : i32
    return %c0_i32, %c0_i32_0 : i32, i32
  }
  func.func @transform_3(%arg0: i32) -> (i32, i32) {
    %c0_i32 = arith.constant 0 : i32
    %c0_i32_0 = arith.constant 0 : i32
    %c0_i32_1 = arith.constant 0 : i32
    return %c0_i32, %c0_i32_0 : i32, i32
  }
  func.func @transform_4(%arg0: i32) -> (i32, i32) {
    %c0_i32 = arith.constant 0 : i32
    %c0_i32_0 = arith.constant 0 : i32
    %c0_i32_1 = arith.constant 0 : i32
    return %c0_i32, %c0_i32_0 : i32, i32
  }
  func.func @transform_5(%arg0: i32) -> (i32, i32) {
    %c0_i32 = arith.constant 0 : i32
    %c0_i32_0 = arith.constant 0 : i32
    %c0_i32_1 = arith.constant 0 : i32
    return %c0_i32, %c0_i32_0 : i32, i32
  }
  func.func @transform_6(%arg0: i32) -> (i32, i32) {
    %c0_i32 = arith.constant 0 : i32
    %c0_i32_0 = arith.constant 0 : i32
    return %arg0, %c0_i32 : i32, i32
  }
}

</mosaic_0001>

<llo_original>
// kernel: tpu_custom_call.1
$region0: #{tpu_custom_call.1}
  #allocation0 [shape = 'u32[]', space=smem, size = 0x4, offset = 0x4, fixed_abs, tag = 'smem constant byte address 0x4 - core index']
  #allocation1 [shape = 'u32[144,128]{1,0:T(1,128)}', space=vmem, size = 0x12000, scoped, tag = 'internal scratch']
  %s0 = inlined_call_operand.vmem [shape: s32[8,1], index: 0, kind: input, shape index: {}]
  %s1 = inlined_call_operand.vmem [shape: f32[8,128], index: 1, kind: input, shape index: {}]
  %s2 = inlined_call_operand.hbm [shape: bf16[384,768], index: 2, kind: input, shape index: {}]
  %s3 = inlined_call_operand.vmem [shape: f32[6,128], index: 3, kind: input, shape index: {}]
  %s4 = inlined_call_operand.vmem [shape: f32[1,128], index: 4, kind: input, shape index: {}]
  %s5 = inlined_call_operand.vmem [shape: f32[1,128], index: 5, kind: input, shape index: {}]
  %s6 = inlined_call_operand.hbm [shape: f32[8,128], index: 6, kind: output, shape index: {}]
  %s7 = sld [smem:[#allocation0]]
  $region38: #{tpu_custom_call.1} parent=0
    _
  %s9 = ssub.s32 1, %s7
  %s10 = scalar_select 0, %s9, %s7
  $region1: #{tpu_custom_call.1} parent=0
    #allocation2 [shape = 'u8[589824]{0}', space=vmem, size = 0x90000, scoped, tag = 'input window, operand 2, single buffered']
    #allocation3 [shape = 's32[1]{0}', space=sflag, size = 0x4, scoped, tag = 'scoped memory for tpu_custom_call.1']
    #allocation4 [shape = 's32[1]{0}', space=sflag, size = 0x4, scoped, tag = 'scoped memory for tpu_custom_call.1']
    #allocation5 [shape = 'u8[4096]{0}', space=vmem, size = 0x1000, scoped, tag = 'output window, operand 0, single buffered']
    %11 = vsyncpa [#allocation3], 0
    %12 = vsyncpa [#allocation4], 0
    // Predicated region
    $region2: #{tpu_custom_call.1} parent=1 // pred_check
      _
    $region3: #{tpu_custom_call.1} parent=1 // pred_check_branch
      %14 = sbr.rel (0) target = $region5
    $region4: #{tpu_custom_call.1} parent=1 // pred_region
      _
    $region5: #{tpu_custom_call.1} parent=1 // pred_fallthru
      _
    // Predicated region
    $region6: #{tpu_custom_call.1} parent=1 // pred_check
      _
    $region7: #{tpu_custom_call.1} parent=1 // pred_check_branch
      %16 = sbr.rel (0) target = $region9
    $region8: #{tpu_custom_call.1} parent=1 // pred_region
      _
    $region9: #{tpu_custom_call.1} parent=1 // pred_fallthru
      _
    // Predicated region
    $region10: #{tpu_custom_call.1} parent=1 // pred_check
      _
    $region11: #{tpu_custom_call.1} parent=1 // pred_check_branch
      %18 = sbr.rel (0) target = $region13
    $region12: #{tpu_custom_call.1} parent=1 // pred_region
      %s20 = ssub.s32 18432, 18432
      %21 = vsyncadd [#allocation3], %s20
      %s22 = sshll.u32 [#allocation2], 4
      %s23 = int_to_ptr.vmem [resolvable:$true] %s22
      %28 = dma.hbm_to_vmem [thread:$0]  %s2, 18432, %s23, [#allocation3], 384, 384, 24
    $region13: #{tpu_custom_call.1} parent=1 // pred_fallthru
      _
    // Predicated region
    $region14: #{tpu_custom_call.1} parent=1 // pred_check
      _
    $region15: #{tpu_custom_call.1} parent=1 // pred_check_branch
      %30 = sbr.rel (0) target = $region17
    $region16: #{tpu_custom_call.1} parent=1 // pred_region
      _
    $region17: #{tpu_custom_call.1} parent=1 // pred_fallthru
      _
    // Predicated region
    $region18: #{tpu_custom_call.1} parent=1 // pred_check
      _
    $region19: #{tpu_custom_call.1} parent=1 // pred_check_branch
      %32 = sbr.rel (0) target = $region21
    $region20: #{tpu_custom_call.1} parent=1 // pred_region
      _
    $region21: #{tpu_custom_call.1} parent=1 // pred_fallthru
      _
    // Predicated region
    $region22: #{tpu_custom_call.1} parent=1 // pred_check
      _
    $region23: #{tpu_custom_call.1} parent=1 // pred_check_branch
      %34 = sbr.rel (0) target = $region25
    $region24: #{tpu_custom_call.1} parent=1 // pred_region
      _
    $region25: #{tpu_custom_call.1} parent=1 // pred_fallthru
      _
    // Predicated region
    $region26: #{tpu_custom_call.1} parent=1 // pred_check
      _
    $region27: #{tpu_custom_call.1} parent=1 // pred_check_branch
      %36 = sbr.rel (0) target = $region29
    $region28: #{tpu_custom_call.1} parent=1 // pred_region
      %37 = dma.done [#allocation3], 18432
    $region29: #{tpu_custom_call.1} parent=1 // pred_fallthru
      _
    %v39 = vld [vmem:[%s1] sm:$0xff]
    %v40 = vld [vmem:[%s0] sm:$0xff]
    %v41 = vpack.c.bf16 %v39, %v39
    %v42 = vunpack.c.l.bf16 %v41
    %v43 = vsub.f32 %v39, %v42
    %v44 = vpack.c.bf16 %v43, %v43
    %v45 = vld [vmem:[#allocation2] sm:$0xff]
    %v46 = vld [vmem:[#allocation2 + $0x8] sm:$0xff]
    %v47 = vld [vmem:[#allocation2 + $0x10] sm:$0xff]
    %v48 = vld [vmem:[#allocation2 + $0x18] sm:$0xff]
    %v49 = vld [vmem:[#allocation2 + $0x20] sm:$0xff]
    %v50 = vld [vmem:[#allocation2 + $0x28] sm:$0xff]
    %v51 = vld [vmem:[#allocation2 + $0x30] sm:$0xff]
    %v52 = vld [vmem:[#allocation2 + $0x38] sm:$0xff]
    %v53 = vld [vmem:[#allocation2 + $0x40] sm:$0xff]
    %v54 = vld [vmem:[#allocation2 + $0x48] sm:$0xff]
    %v55 = vld [vmem:[#allocation2 + $0x50] sm:$0xff]
    %v56 = vld [vmem:[#allocation2 + $0x58] sm:$0xff]
    %v57 = vld [vmem:[#allocation2 + $0x60] sm:$0xff]
    %v58 = vld [vmem:[#allocation2 + $0x68] sm:$0xff]
    %v59 = vld [vmem:[#allocation2 + $0x70] sm:$0xff]
    %v60 = vld [vmem:[#allocation2 + $0x78] sm:$0xff]
    %v61 = vld [vmem:[#allocation2 + $0x80] sm:$0xff]
    %v62 = vld [vmem:[#allocation2 + $0x88] sm:$0xff]
    %v63 = vld [vmem:[#allocation2 + $0x90] sm:$0xff]
    %v64 = vld [vmem:[#allocation2 + $0x98] sm:$0xff]
    %v65 = vld [vmem:[#allocation2 + $0xa0] sm:$0xff]
    %v66 = vld [vmem:[#allocation2 + $0xa8] sm:$0xff]
    %v67 = vld [vmem:[#allocation2 + $0xb0] sm:$0xff]
    %v68 = vld [vmem:[#allocation2 + $0xb8] sm:$0xff]
    %v69 = vld [vmem:[#allocation2 + $0xc0] sm:$0xff]
    %v70 = vld [vmem:[#allocation2 + $0xc8] sm:$0xff]
    %v71 = vld [vmem:[#allocation2 + $0xd0] sm:$0xff]
    %v72 = vld [vmem:[#allocation2 + $0xd8] sm:$0xff]
    %v73 = vld [vmem:[#allocation2 + $0xe0] sm:$0xff]
    %v74 = vld [vmem:[#allocation2 + $0xe8] sm:$0xff]
    %v75 = vld [vmem:[#allocation2 + $0xf0] sm:$0xff]
    %v76 = vld [vmem:[#allocation2 + $0xf8] sm:$0xff]
    %v77 = vld [vmem:[#allocation2 + $0x100] sm:$0xff]
    %v78 = vld [vmem:[#allocation2 + $0x108] sm:$0xff]
    %v79 = vld [vmem:[#allocation2 + $0x110] sm:$0xff]
    %v80 = vld [vmem:[#allocation2 + $0x118] sm:$0xff]
    %v81 = vld [vmem:[#allocation2 + $0x120] sm:$0xff]
    %v82 = vld [vmem:[#allocation2 + $0x128] sm:$0xff]
    %v83 = vld [vmem:[#allocation2 + $0x130] sm:$0xff]
    %v84 = vld [vmem:[#allocation2 + $0x138] sm:$0xff]
    %v85 = vld [vmem:[#allocation2 + $0x140] sm:$0xff]
    %v86 = vld [vmem:[#allocation2 + $0x148] sm:$0xff]
    %v87 = vld [vmem:[#allocation2 + $0x150] sm:$0xff]
    %v88 = vld [vmem:[#allocation2 + $0x158] sm:$0xff]
    %v89 = vld [vmem:[#allocation2 + $0x160] sm:$0xff]
    %v90 = vld [vmem:[#allocation2 + $0x168] sm:$0xff]
    %v91 = vld [vmem:[#allocation2 + $0x170] sm:$0xff]
    %v92 = vld [vmem:[#allocation2 + $0x178] sm:$0xff]
    %v93 = vld [vmem:[#allocation2 + $0x180] sm:$0xff]
    %v94 = vld [vmem:[#allocation2 + $0x188] sm:$0xff]
    %v95 = vld [vmem:[#allocation2 + $0x190] sm:$0xff]
    %v96 = vld [vmem:[#allocation2 + $0x198] sm:$0xff]
    %v97 = vld [vmem:[#allocation2 + $0x1a0] sm:$0xff]
    %v98 = vld [vmem:[#allocation2 + $0x1a8] sm:$0xff]
    %v99 = vld [vmem:[#allocation2 + $0x1b0] sm:$0xff]
    %v100 = vld [vmem:[#allocation2 + $0x1b8] sm:$0xff]
    %v101 = vld [vmem:[#allocation2 + $0x1c0] sm:$0xff]
    %v102 = vld [vmem:[#allocation2 + $0x1c8] sm:$0xff]
    %v103 = vld [vmem:[#allocation2 + $0x1d0] sm:$0xff]
    %v104 = vld [vmem:[#allocation2 + $0x1d8] sm:$0xff]
    %v105 = vld [vmem:[#allocation2 + $0x1e0] sm:$0xff]
    %v106 = vld [vmem:[#allocation2 + $0x1e8] sm:$0xff]
    %v107 = vld [vmem:[#allocation2 + $0x1f0] sm:$0xff]
    %v108 = vld [vmem:[#allocation2 + $0x1f8] sm:$0xff]
    %v109 = vld [vmem:[#allocation2 + $0x200] sm:$0xff]
    %v110 = vld [vmem:[#allocation2 + $0x208] sm:$0xff]
    %v111 = vld [vmem:[#allocation2 + $0x210] sm:$0xff]
    %v112 = vld [vmem:[#allocation2 + $0x218] sm:$0xff]
    %v113 = vld [vmem:[#allocation2 + $0x220] sm:$0xff]
    %v114 = vld [vmem:[#allocation2 + $0x228] sm:$0xff]
    %v115 = vld [vmem:[#allocation2 + $0x230] sm:$0xff]
    %v116 = vld [vmem:[#allocation2 + $0x238] sm:$0xff]
    %v117 = vld [vmem:[#allocation2 + $0x240] sm:$0xff]
    %v118 = vld [vmem:[#allocation2 + $0x248] sm:$0xff]
    %v119 = vld [vmem:[#allocation2 + $0x250] sm:$0xff]
    %v120 = vld [vmem:[#allocation2 + $0x258] sm:$0xff]
    %v121 = vld [vmem:[#allocation2 + $0x260] sm:$0xff]
    %v122 = vld [vmem:[#allocation2 + $0x268] sm:$0xff]
    %v123 = vld [vmem:[#allocation2 + $0x270] sm:$0xff]
    %v124 = vld [vmem:[#allocation2 + $0x278] sm:$0xff]
    %v125 = vld [vmem:[#allocation2 + $0x280] sm:$0xff]
    %v126 = vld [vmem:[#allocation2 + $0x288] sm:$0xff]
    %v127 = vld [vmem:[#allocation2 + $0x290] sm:$0xff]
    %v128 = vld [vmem:[#allocation2 + $0x298] sm:$0xff]
    %v129 = vld [vmem:[#allocation2 + $0x2a0] sm:$0xff]
    %v130 = vld [vmem:[#allocation2 + $0x2a8] sm:$0xff]
    %v131 = vld [vmem:[#allocation2 + $0x2b0] sm:$0xff]
    %v132 = vld [vmem:[#allocation2 + $0x2b8] sm:$0xff]
    %v133 = vld [vmem:[#allocation2 + $0x2c0] sm:$0xff]
    %v134 = vld [vmem:[#allocation2 + $0x2c8] sm:$0xff]
    %v135 = vld [vmem:[#allocation2 + $0x2d0] sm:$0xff]
    %v136 = vld [vmem:[#allocation2 + $0x2d8] sm:$0xff]
    %v137 = vld [vmem:[#allocation2 + $0x2e0] sm:$0xff]
    %v138 = vld [vmem:[#allocation2 + $0x2e8] sm:$0xff]
    %v139 = vld [vmem:[#allocation2 + $0x2f0] sm:$0xff]
    %v140 = vld [vmem:[#allocation2 + $0x2f8] sm:$0xff]
    %v141 = vld [vmem:[#allocation2 + $0x300] sm:$0xff]
    %v142 = vld [vmem:[#allocation2 + $0x308] sm:$0xff]
    %v143 = vld [vmem:[#allocation2 + $0x310] sm:$0xff]
    %v144 = vld [vmem:[#allocation2 + $0x318] sm:$0xff]
    %v145 = vld [vmem:[#allocation2 + $0x320] sm:$0xff]
    %v146 = vld [vmem:[#allocation2 + $0x328] sm:$0xff]
    %v147 = vld [vmem:[#allocation2 + $0x330] sm:$0xff]
    %v148 = vld [vmem:[#allocation2 + $0x338] sm:$0xff]
    %v149 = vld [vmem:[#allocation2 + $0x340] sm:$0xff]
    %v150 = vld [vmem:[#allocation2 + $0x348] sm:$0xff]
    %v151 = vld [vmem:[#allocation2 + $0x350] sm:$0xff]
    %v152 = vld [vmem:[#allocation2 + $0x358] sm:$0xff]
    %v153 = vld [vmem:[#allocation2 + $0x360] sm:$0xff]
    %v154 = vld [vmem:[#allocation2 + $0x368] sm:$0xff]
    %v155 = vld [vmem:[#allocation2 + $0x370] sm:$0xff]
    %v156 = vld [vmem:[#allocation2 + $0x378] sm:$0xff]
    %v157 = vld [vmem:[#allocation2 + $0x380] sm:$0xff]
    %v158 = vld [vmem:[#allocation2 + $0x388] sm:$0xff]
    %v159 = vld [vmem:[#allocation2 + $0x390] sm:$0xff]
    %v160 = vld [vmem:[#allocation2 + $0x398] sm:$0xff]
    %v161 = vld [vmem:[#allocation2 + $0x3a0] sm:$0xff]
    %v162 = vld [vmem:[#allocation2 + $0x3a8] sm:$0xff]
    %v163 = vld [vmem:[#allocation2 + $0x3b0] sm:$0xff]
    %v164 = vld [vmem:[#allocation2 + $0x3b8] sm:$0xff]
    %v165 = vld [vmem:[#allocation2 + $0x3c0] sm:$0xff]
    %v166 = vld [vmem:[#allocation2 + $0x3c8] sm:$0xff]
    %v167 = vld [vmem:[#allocation2 + $0x3d0] sm:$0xff]
    %v168 = vld [vmem:[#allocation2 + $0x3d8] sm:$0xff]
    %v169 = vld [vmem:[#allocation2 + $0x3e0] sm:$0xff]
    %v170 = vld [vmem:[#allocation2 + $0x3e8] sm:$0xff]
    %v171 = vld [vmem:[#allocation2 + $0x3f0] sm:$0xff]
    %v172 = vld [vmem:[#allocation2 + $0x3f8] sm:$0xff]
    %v173 = vld [vmem:[#allocation2 + $0x400] sm:$0xff]
    %v174 = vld [vmem:[#allocation2 + $0x408] sm:$0xff]
    %v175 = vld [vmem:[#allocation2 + $0x410] sm:$0xff]
    %v176 = vld [vmem:[#allocation2 + $0x418] sm:$0xff]
    %v177 = vld [vmem:[#allocation2 + $0x420] sm:$0xff]
    %v178 = vld [vmem:[#allocation2 + $0x428] sm:$0xff]
    %v179 = vld [vmem:[#allocation2 + $0x430] sm:$0xff]
    %v180 = vld [vmem:[#allocation2 + $0x438] sm:$0xff]
    %v181 = vld [vmem:[#allocation2 + $0x440] sm:$0xff]
    %v182 = vld [vmem:[#allocation2 + $0x448] sm:$0xff]
    %v183 = vld [vmem:[#allocation2 + $0x450] sm:$0xff]
    %v184 = vld [vmem:[#allocation2 + $0x458] sm:$0xff]
    %v185 = vld [vmem:[#allocation2 + $0x460] sm:$0xff]
    %v186 = vld [vmem:[#allocation2 + $0x468] sm:$0xff]
    %v187 = vld [vmem:[#allocation2 + $0x470] sm:$0xff]
    %v188 = vld [vmem:[#allocation2 + $0x478] sm:$0xff]
    %v333 = vunpack.c.l.b16 %v45
    %v334 = vunpack.c.h.b16 %v45
    %v335 = vunpack.c.l.b16 %v46
    %v336 = vunpack.c.h.b16 %v46
    %v337 = vunpack.c.l.b16 %v47
    %v338 = vunpack.c.h.b16 %v47
    %v339 = vunpack.c.l.b16 %v48
    %v340 = vunpack.c.h.b16 %v48
    %v341 = vunpack.c.l.b16 %v49
    %v342 = vunpack.c.h.b16 %v49
    %v343 = vunpack.c.l.b16 %v50
    %v344 = vunpack.c.h.b16 %v50
    %v345 = vunpack.c.l.b16 %v51
    %v346 = vunpack.c.h.b16 %v51
    %v347 = vunpack.c.l.b16 %v52
    %v348 = vunpack.c.h.b16 %v52
    %v349 = vunpack.c.l.b16 %v53
    %v350 = vunpack.c.h.b16 %v53
    %v351 = vunpack.c.l.b16 %v54
    %v352 = vunpack.c.h.b16 %v54
    %v353 = vunpack.c.l.b16 %v55
    %v354 = vunpack.c.h.b16 %v55
    %v355 = vunpack.c.l.b16 %v56
    %v356 = vunpack.c.h.b16 %v56
    %v357 = vunpack.c.l.b16 %v57
    %v358 = vunpack.c.h.b16 %v57
    %v359 = vunpack.c.l.b16 %v58
    %v360 = vunpack.c.h.b16 %v58
    %v361 = vunpack.c.l.b16 %v59
    %v362 = vunpack.c.h.b16 %v59
    %v363 = vunpack.c.l.b16 %v60
    %v364 = vunpack.c.h.b16 %v60
    %v365 = vunpack.c.l.b16 %v61
    %v366 = vunpack.c.h.b16 %v61
    %v367 = vunpack.c.l.b16 %v62
    %v368 = vunpack.c.h.b16 %v62
    %v369 = vunpack.c.l.b16 %v63
    %v370 = vunpack.c.h.b16 %v63
    %v371 = vunpack.c.l.b16 %v64
    %v372 = vunpack.c.h.b16 %v64
    %v373 = vunpack.c.l.b16 %v65
    %v374 = vunpack.c.h.b16 %v65
    %v375 = vunpack.c.l.b16 %v66
    %v376 = vunpack.c.h.b16 %v66
    %v377 = vunpack.c.l.b16 %v67
    %v378 = vunpack.c.h.b16 %v67
    %v379 = vunpack.c.l.b16 %v68
    %v380 = vunpack.c.h.b16 %v68
    %v381 = vunpack.c.l.b16 %v69
    %v382 = vunpack.c.h.b16 %v69
    %v383 = vunpack.c.l.b16 %v70
    %v384 = vunpack.c.h.b16 %v70
    %v385 = vunpack.c.l.b16 %v71
    %v386 = vunpack.c.h.b16 %v71
    %v387 = vunpack.c.l.b16 %v72
    %v388 = vunpack.c.h.b16 %v72
    %v389 = vunpack.c.l.b16 %v73
    %v390 = vunpack.c.h.b16 %v73
    %v391 = vunpack.c.l.b16 %v74
    %v392 = vunpack.c.h.b16 %v74
    %v393 = vunpack.c.l.b16 %v75
    %v394 = vunpack.c.h.b16 %v75
    %v395 = vunpack.c.l.b16 %v76
    %v396 = vunpack.c.h.b16 %v76
    %v397 = vunpack.c.l.b16 %v77
    %v398 = vunpack.c.h.b16 %v77
    %v399 = vunpack.c.l.b16 %v78
    %v400 = vunpack.c.h.b16 %v78
    %v401 = vunpack.c.l.b16 %v79
    %v402 = vunpack.c.h.b16 %v79
    %v403 = vunpack.c.l.b16 %v80
    %v404 = vunpack.c.h.b16 %v80
    %v405 = vunpack.c.l.b16 %v81
    %v406 = vunpack.c.h.b16 %v81
    %v407 = vunpack.c.l.b16 %v82
    %v408 = vunpack.c.h.b16 %v82
    %v409 = vunpack.c.l.b16 %v83
    %v410 = vunpack.c.h.b16 %v83
    %v411 = vunpack.c.l.b16 %v84
    %v412 = vunpack.c.h.b16 %v84
    %v413 = vunpack.c.l.b16 %v85
    %v414 = vunpack.c.h.b16 %v85
    %v415 = vunpack.c.l.b16 %v86
    %v416 = vunpack.c.h.b16 %v86
    %v417 = vunpack.c.l.b16 %v87
    %v418 = vunpack.c.h.b16 %v87
    %v419 = vunpack.c.l.b16 %v88
    %v420 = vunpack.c.h.b16 %v88
    %v421 = vunpack.c.l.b16 %v89
    %v422 = vunpack.c.h.b16 %v89
    %v423 = vunpack.c.l.b16 %v90
    %v424 = vunpack.c.h.b16 %v90
    %v425 = vunpack.c.l.b16 %v91
    %v426 = vunpack.c.h.b16 %v91
    %v427 = vunpack.c.l.b16 %v92
    %v428 = vunpack.c.h.b16 %v92
    %v429 = vunpack.c.l.b16 %v93
    %v430 = vunpack.c.h.b16 %v93
    %v431 = vunpack.c.l.b16 %v94
    %v432 = vunpack.c.h.b16 %v94
    %v433 = vunpack.c.l.b16 %v95
    %v434 = vunpack.c.h.b16 %v95
    %v435 = vunpack.c.l.b16 %v96
    %v436 = vunpack.c.h.b16 %v96
    %v437 = vunpack.c.l.b16 %v97
    %v438 = vunpack.c.h.b16 %v97
    %v439 = vunpack.c.l.b16 %v98
    %v440 = vunpack.c.h.b16 %v98
    %v441 = vunpack.c.l.b16 %v99
    %v442 = vunpack.c.h.b16 %v99
    %v443 = vunpack.c.l.b16 %v100
    %v444 = vunpack.c.h.b16 %v100
    %v445 = vunpack.c.l.b16 %v101
    %v446 = vunpack.c.h.b16 %v101
    %v447 = vunpack.c.l.b16 %v102
    %v448 = vunpack.c.h.b16 %v102
    %v449 = vunpack.c.l.b16 %v103
    %v450 = vunpack.c.h.b16 %v103
    %v451 = vunpack.c.l.b16 %v104
    %v452 = vunpack.c.h.b16 %v104
    %v453 = vunpack.c.l.b16 %v105
    %v454 = vunpack.c.h.b16 %v105
    %v455 = vunpack.c.l.b16 %v106
    %v456 = vunpack.c.h.b16 %v106
    %v457 = vunpack.c.l.b16 %v107
    %v458 = vunpack.c.h.b16 %v107
    %v459 = vunpack.c.l.b16 %v108
    %v460 = vunpack.c.h.b16 %v108
    %v461 = vunpack.c.l.b16 %v109
    %v462 = vunpack.c.h.b16 %v109
    %v463 = vunpack.c.l.b16 %v110
    %v464 = vunpack.c.h.b16 %v110
    %v465 = vunpack.c.l.b16 %v111
    %v466 = vunpack.c.h.b16 %v111
    %v467 = vunpack.c.l.b16 %v112
    %v468 = vunpack.c.h.b16 %v112
    %v469 = vunpack.c.l.b16 %v113
    %v470 = vunpack.c.h.b16 %v113
    %v471 = vunpack.c.l.b16 %v114
    %v472 = vunpack.c.h.b16 %v114
    %v473 = vunpack.c.l.b16 %v115
    %v474 = vunpack.c.h.b16 %v115
    %v475 = vunpack.c.l.b16 %v116
    %v476 = vunpack.c.h.b16 %v116
    %v477 = vunpack.c.l.b16 %v117
    %v478 = vunpack.c.h.b16 %v117
    %v479 = vunpack.c.l.b16 %v118
    %v480 = vunpack.c.h.b16 %v118
    %v481 = vunpack.c.l.b16 %v119
    %v482 = vunpack.c.h.b16 %v119
    %v483 = vunpack.c.l.b16 %v120
    %v484 = vunpack.c.h.b16 %v120
    %v485 = vunpack.c.l.b16 %v121
    %v486 = vunpack.c.h.b16 %v121
    %v487 = vunpack.c.l.b16 %v122
    %v488 = vunpack.c.h.b16 %v122
    %v489 = vunpack.c.l.b16 %v123
    %v490 = vunpack.c.h.b16 %v123
    %v491 = vunpack.c.l.b16 %v124
    %v492 = vunpack.c.h.b16 %v124
    %v493 = vunpack.c.l.b16 %v125
    %v494 = vunpack.c.h.b16 %v125
    %v495 = vunpack.c.l.b16 %v126
    %v496 = vunpack.c.h.b16 %v126
    %v497 = vunpack.c.l.b16 %v127
    %v498 = vunpack.c.h.b16 %v127
    %v499 = vunpack.c.l.b16 %v128
    %v500 = vunpack.c.h.b16 %v128
    %v501 = vunpack.c.l.b16 %v129
    %v502 = vunpack.c.h.b16 %v129
    %v503 = vunpack.c.l.b16 %v130
    %v504 = vunpack.c.h.b16 %v130
    %v505 = vunpack.c.l.b16 %v131
    %v506 = vunpack.c.h.b16 %v131
    %v507 = vunpack.c.l.b16 %v132
    %v508 = vunpack.c.h.b16 %v132
    %v509 = vunpack.c.l.b16 %v133
    %v510 = vunpack.c.h.b16 %v133
    %v511 = vunpack.c.l.b16 %v134
    %v512 = vunpack.c.h.b16 %v134
    %v513 = vunpack.c.l.b16 %v135
    %v514 = vunpack.c.h.b16 %v135
    %v515 = vunpack.c.l.b16 %v136
    %v516 = vunpack.c.h.b16 %v136
    %v517 = vunpack.c.l.b16 %v137
    %v518 = vunpack.c.h.b16 %v137
    %v519 = vunpack.c.l.b16 %v138
    %v520 = vunpack.c.h.b16 %v138
    %v521 = vunpack.c.l.b16 %v139
    %v522 = vunpack.c.h.b16 %v139
    %v523 = vunpack.c.l.b16 %v140
    %v524 = vunpack.c.h.b16 %v140
    %v525 = vunpack.c.l.b16 %v141
    %v526 = vunpack.c.h.b16 %v141
    %v527 = vunpack.c.l.b16 %v142
    %v528 = vunpack.c.h.b16 %v142
    %v529 = vunpack.c.l.b16 %v143
    %v530 = vunpack.c.h.b16 %v143
    %v531 = vunpack.c.l.b16 %v144
    %v532 = vunpack.c.h.b16 %v144
    %v533 = vunpack.c.l.b16 %v145
    %v534 = vunpack.c.h.b16 %v145
    %v535 = vunpack.c.l.b16 %v146
    %v536 = vunpack.c.h.b16 %v146
    %v537 = vunpack.c.l.b16 %v147
    %v538 = vunpack.c.h.b16 %v147
    %v539 = vunpack.c.l.b16 %v148
    %v540 = vunpack.c.h.b16 %v148
    %v541 = vunpack.c.l.b16 %v149
    %v542 = vunpack.c.h.b16 %v149
    %v543 = vunpack.c.l.b16 %v150
    %v544 = vunpack.c.h.b16 %v150
    %v545 = vunpack.c.l.b16 %v151
    %v546 = vunpack.c.h.b16 %v151
    %v547 = vunpack.c.l.b16 %v152
    %v548 = vunpack.c.h.b16 %v152
    %v549 = vunpack.c.l.b16 %v153
    %v550 = vunpack.c.h.b16 %v153
    %v551 = vunpack.c.l.b16 %v154
    %v552 = vunpack.c.h.b16 %v154
    %v553 = vunpack.c.l.b16 %v155
    %v554 = vunpack.c.h.b16 %v155
    %v555 = vunpack.c.l.b16 %v156
    %v556 = vunpack.c.h.b16 %v156
    %v557 = vunpack.c.l.b16 %v157
    %v558 = vunpack.c.h.b16 %v157
    %v559 = vunpack.c.l.b16 %v158
    %v560 = vunpack.c.h.b16 %v158
    %v561 = vunpack.c.l.b16 %v159
    %v562 = vunpack.c.h.b16 %v159
    %v563 = vunpack.c.l.b16 %v160
    %v564 = vunpack.c.h.b16 %v160
    %v565 = vunpack.c.l.b16 %v161
    %v566 = vunpack.c.h.b16 %v161
    %v567 = vunpack.c.l.b16 %v162
    %v568 = vunpack.c.h.b16 %v162
    %v569 = vunpack.c.l.b16 %v163
    %v570 = vunpack.c.h.b16 %v163
    %v571 = vunpack.c.l.b16 %v164
    %v572 = vunpack.c.h.b16 %v164
    %v573 = vunpack.c.l.b16 %v165
    %v574 = vunpack.c.h.b16 %v165
    %v575 = vunpack.c.l.b16 %v166
    %v576 = vunpack.c.h.b16 %v166
    %v577 = vunpack.c.l.b16 %v167
    %v578 = vunpack.c.h.b16 %v167
    %v579 = vunpack.c.l.b16 %v168
    %v580 = vunpack.c.h.b16 %v168
    %v581 = vunpack.c.l.b16 %v169
    %v582 = vunpack.c.h.b16 %v169
    %v583 = vunpack.c.l.b16 %v170
    %v584 = vunpack.c.h.b16 %v170
    %v585 = vunpack.c.l.b16 %v171
    %v586 = vunpack.c.h.b16 %v171
    %v587 = vunpack.c.l.b16 %v172
    %v588 = vunpack.c.h.b16 %v172
    %v589 = vunpack.c.l.b16 %v173
    %v590 = vunpack.c.h.b16 %v173
    %v591 = vunpack.c.l.b16 %v174
    %v592 = vunpack.c.h.b16 %v174
    %v593 = vunpack.c.l.b16 %v175
    %v594 = vunpack.c.h.b16 %v175
    %v595 = vunpack.c.l.b16 %v176
    %v596 = vunpack.c.h.b16 %v176
    %v597 = vunpack.c.l.b16 %v177
    %v598 = vunpack.c.h.b16 %v177
    %v599 = vunpack.c.l.b16 %v178
    %v600 = vunpack.c.h.b16 %v178
    %v601 = vunpack.c.l.b16 %v179
    %v602 = vunpack.c.h.b16 %v179
    %v603 = vunpack.c.l.b16 %v180
    %v604 = vunpack.c.h.b16 %v180
    %v605 = vunpack.c.l.b16 %v181
    %v606 = vunpack.c.h.b16 %v181
    %v607 = vunpack.c.l.b16 %v182
    %v608 = vunpack.c.h.b16 %v182
    %v609 = vunpack.c.l.b16 %v183
    %v610 = vunpack.c.h.b16 %v183
    %v611 = vunpack.c.l.b16 %v184
    %v612 = vunpack.c.h.b16 %v184
    %v613 = vunpack.c.l.b16 %v185
    %v614 = vunpack.c.h.b16 %v185
    %v615 = vunpack.c.l.b16 %v186
    %v616 = vunpack.c.h.b16 %v186
    %v617 = vunpack.c.l.b16 %v187
    %v618 = vunpack.c.h.b16 %v187
    %v619 = vunpack.c.l.b16 %v188
    %v620 = vunpack.c.h.b16 %v188
    %v621 = vpack.c.b16 %v339, %v333
    %v622 = vpack.c.b16 %v340, %v334
    %v623 = vpack.c.b16 %v341, %v335
    %v624 = vpack.c.b16 %v342, %v336
    %v625 = vpack.c.b16 %v343, %v337
    %v626 = vpack.c.b16 %v344, %v338
    %v627 = vpack.c.b16 %v351, %v345
    %v628 = vpack.c.b16 %v352, %v346
    %v629 = vpack.c.b16 %v353, %v347
    %v630 = vpack.c.b16 %v354, %v348
    %v631 = vpack.c.b16 %v355, %v349
    %v632 = vpack.c.b16 %v356, %v350
    %v633 = vpack.c.b16 %v363, %v357
    %v634 = vpack.c.b16 %v364, %v358
    %v635 = vpack.c.b16 %v365, %v359
    %v636 = vpack.c.b16 %v366, %v360
    %v637 = vpack.c.b16 %v367, %v361
    %v638 = vpack.c.b16 %v368, %v362
    %v639 = vpack.c.b16 %v375, %v369
    %v640 = vpack.c.b16 %v376, %v370
    %v641 = vpack.c.b16 %v377, %v371
    %v642 = vpack.c.b16 %v378, %v372
    %v643 = vpack.c.b16 %v379, %v373
    %v644 = vpack.c.b16 %v380, %v374
    %v645 = vpack.c.b16 %v387, %v381
    %v646 = vpack.c.b16 %v388, %v382
    %v647 = vpack.c.b16 %v389, %v383
    %v648 = vpack.c.b16 %v390, %v384
    %v649 = vpack.c.b16 %v391, %v385
    %v650 = vpack.c.b16 %v392, %v386
    %v651 = vpack.c.b16 %v399, %v393
    %v652 = vpack.c.b16 %v400, %v394
    %v653 = vpack.c.b16 %v401, %v395
    %v654 = vpack.c.b16 %v402, %v396
    %v655 = vpack.c.b16 %v403, %v397
    %v656 = vpack.c.b16 %v404, %v398
    %v657 = vpack.c.b16 %v411, %v405
    %v658 = vpack.c.b16 %v412, %v406
    %v659 = vpack.c.b16 %v413, %v407
    %v660 = vpack.c.b16 %v414, %v408
    %v661 = vpack.c.b16 %v415, %v409
    %v662 = vpack.c.b16 %v416, %v410
    %v663 = vpack.c.b16 %v423, %v417
    %v664 = vpack.c.b16 %v424, %v418
    %v665 = vpack.c.b16 %v425, %v419
    %v666 = vpack.c.b16 %v426, %v420
    %v667 = vpack.c.b16 %v427, %v421
    %v668 = vpack.c.b16 %v428, %v422
    %v669 = vpack.c.b16 %v435, %v429
    %v670 = vpack.c.b16 %v436, %v430
    %v671 = vpack.c.b16 %v437, %v431
    %v672 = vpack.c.b16 %v438, %v432
    %v673 = vpack.c.b16 %v439, %v433
    %v674 = vpack.c.b16 %v440, %v434
    %v675 = vpack.c.b16 %v447, %v441
    %v676 = vpack.c.b16 %v448, %v442
    %v677 = vpack.c.b16 %v449, %v443
    %v678 = vpack.c.b16 %v450, %v444
    %v679 = vpack.c.b16 %v451, %v445
    %v680 = vpack.c.b16 %v452, %v446
    %v681 = vpack.c.b16 %v459, %v453
    %v682 = vpack.c.b16 %v460, %v454
    %v683 = vpack.c.b16 %v461, %v455
    %v684 = vpack.c.b16 %v462, %v456
    %v685 = vpack.c.b16 %v463, %v457
    %v686 = vpack.c.b16 %v464, %v458
    %v687 = vpack.c.b16 %v471, %v465
    %v688 = vpack.c.b16 %v472, %v466
    %v689 = vpack.c.b16 %v473, %v467
    %v690 = vpack.c.b16 %v474, %v468
    %v691 = vpack.c.b16 %v475, %v469
    %v692 = vpack.c.b16 %v476, %v470
    %v693 = vpack.c.b16 %v483, %v477
    %v694 = vpack.c.b16 %v484, %v478
    %v695 = vpack.c.b16 %v485, %v479
    %v696 = vpack.c.b16 %v486, %v480
    %v697 = vpack.c.b16 %v487, %v481
    %v698 = vpack.c.b16 %v488, %v482
    %v699 = vpack.c.b16 %v495, %v489
    %v700 = vpack.c.b16 %v496, %v490
    %v701 = vpack.c.b16 %v497, %v491
    %v702 = vpack.c.b16 %v498, %v492
    %v703 = vpack.c.b16 %v499, %v493
    %v704 = vpack.c.b16 %v500, %v494
    %v705 = vpack.c.b16 %v507, %v501
    %v706 = vpack.c.b16 %v508, %v502
    %v707 = vpack.c.b16 %v509, %v503
    %v708 = vpack.c.b16 %v510, %v504
    %v709 = vpack.c.b16 %v511, %v505
    %v710 = vpack.c.b16 %v512, %v506
    %v711 = vpack.c.b16 %v519, %v513
    %v712 = vpack.c.b16 %v520, %v514
    %v713 = vpack.c.b16 %v521, %v515
    %v714 = vpack.c.b16 %v522, %v516
    %v715 = vpack.c.b16 %v523, %v517
    %v716 = vpack.c.b16 %v524, %v518
    %v717 = vpack.c.b16 %v531, %v525
    %v718 = vpack.c.b16 %v532, %v526
    %v719 = vpack.c.b16 %v533, %v527
    %v720 = vpack.c.b16 %v534, %v528
    %v721 = vpack.c.b16 %v535, %v529
    %v722 = vpack.c.b16 %v536, %v530
    %v723 = vpack.c.b16 %v543, %v537
    %v724 = vpack.c.b16 %v544, %v538
    %v725 = vpack.c.b16 %v545, %v539
    %v726 = vpack.c.b16 %v546, %v540
    %v727 = vpack.c.b16 %v547, %v541
    %v728 = vpack.c.b16 %v548, %v542
    %v729 = vpack.c.b16 %v555, %v549
    %v730 = vpack.c.b16 %v556, %v550
    %v731 = vpack.c.b16 %v557, %v551
    %v732 = vpack.c.b16 %v558, %v552
    %v733 = vpack.c.b16 %v559, %v553
    %v734 = vpack.c.b16 %v560, %v554
    %v735 = vpack.c.b16 %v567, %v561
    %v736 = vpack.c.b16 %v568, %v562
    %v737 = vpack.c.b16 %v569, %v563
    %v738 = vpack.c.b16 %v570, %v564
    %v739 = vpack.c.b16 %v571, %v565
    %v740 = vpack.c.b16 %v572, %v566
    %v741 = vpack.c.b16 %v579, %v573
    %v742 = vpack.c.b16 %v580, %v574
    %v743 = vpack.c.b16 %v581, %v575
    %v744 = vpack.c.b16 %v582, %v576
    %v745 = vpack.c.b16 %v583, %v577
    %v746 = vpack.c.b16 %v584, %v578
    %v747 = vpack.c.b16 %v591, %v585
    %v748 = vpack.c.b16 %v592, %v586
    %v749 = vpack.c.b16 %v593, %v587
    %v750 = vpack.c.b16 %v594, %v588
    %v751 = vpack.c.b16 %v595, %v589
    %v752 = vpack.c.b16 %v596, %v590
    %v753 = vpack.c.b16 %v603, %v597
    %v754 = vpack.c.b16 %v604, %v598
    %v755 = vpack.c.b16 %v605, %v599
    %v756 = vpack.c.b16 %v606, %v600
    %v757 = vpack.c.b16 %v607, %v601
    %v758 = vpack.c.b16 %v608, %v602
    %v759 = vpack.c.b16 %v615, %v609
    %v760 = vpack.c.b16 %v616, %v610
    %v761 = vpack.c.b16 %v617, %v611
    %v762 = vpack.c.b16 %v618, %v612
    %v763 = vpack.c.b16 %v619, %v613
    %v764 = vpack.c.b16 %v620, %v614
    %909 = vmatprep.subr.bf16.mxu0 %v622
    %910 = vmatpush1.bf16.msra.mxu0 %v621
    %911 = vmatprep.subr.bf16.mxu0 %v628
    %912 = vmatpush1.bf16.msra.mxu0 %v627
    %913 = vmatprep.subr.bf16.mxu0 %v634
    %914 = vmatpush1.bf16.msra.mxu0 %v633
    %915 = vmatprep.subr.bf16.mxu0 %v640
    %916 = vmatpush1.bf16.msra.mxu0 %v639
    %917 = vmatprep.subr.bf16.mxu0 %v646
    %918 = vmatpush1.bf16.msra.mxu0 %v645
    %919 = vmatprep.subr.bf16.mxu0 %v652
    %920 = vmatpush1.bf16.msra.mxu0 %v651
    %921 = vmatprep.subr.bf16.mxu0 %v658
    %922 = vmatpush1.bf16.msra.mxu0 %v657
    %923 = vmatprep.subr.bf16.mxu0 %v664
    %924 = vmatpush1.bf16.msra.mxu0 %v663
    %925 = vmatprep.subr.bf16.mxu0 %v670
    %926 = vmatpush1.bf16.msra.mxu0 %v669
    %927 = vmatprep.subr.bf16.mxu0 %v676
    %928 = vmatpush1.bf16.msra.mxu0 %v675
    %929 = vmatprep.subr.bf16.mxu0 %v682
    %930 = vmatpush1.bf16.msra.mxu0 %v681
    %931 = vmatprep.subr.bf16.mxu0 %v688
    %932 = vmatpush1.bf16.msra.mxu0 %v687
    %933 = vmatprep.subr.bf16.mxu0 %v694
    %934 = vmatpush1.bf16.msra.mxu0 %v693
    %935 = vmatprep.subr.bf16.mxu0 %v700
    %936 = vmatpush1.bf16.msra.mxu0 %v699
    %937 = vmatprep.subr.bf16.mxu0 %v706
    %938 = vmatpush1.bf16.msra.mxu0 %v705
    %939 = vmatprep.subr.bf16.mxu0 %v712
    %940 = vmatpush1.bf16.msra.mxu0 %v711
    %941 = vmatprep.mubr.bf16.mxu0 %v41
    %942 = vmatmul.mubr.bf16.gmra.mrb[0].mxu0 %v41
    %v943 = vpop.f32.mrb[0].mxu0
    %v944 = vadd.f32 0.0, %v943
    %v945 = vpop.f32.mrb[0].mxu0
    %v946 = vadd.f32 0.0, %v945
    %v947 = vpop.f32.mrb[0].mxu0
    %v948 = vpop.f32.mrb[0].mxu0
    %949 = vdwg.mxu0
    %950 = vmatprep.subr.bf16.mxu0 %v718
    %951 = vmatpush1.bf16.msra.mxu0 %v717
    %952 = vmatprep.subr.bf16.mxu0 %v724
    %953 = vmatpush1.bf16.msra.mxu0 %v723
    %954 = vmatprep.subr.bf16.mxu0 %v730
    %955 = vmatpush1.bf16.msra.mxu0 %v729
    %956 = vmatprep.subr.bf16.mxu0 %v736
    %957 = vmatpush1.bf16.msra.mxu0 %v735
    %958 = vmatprep.subr.bf16.mxu0 %v742
    %959 = vmatpush1.bf16.msra.mxu0 %v741
    %960 = vmatprep.subr.bf16.mxu0 %v748
    %961 = vmatpush1.bf16.msra.mxu0 %v747
    %962 = vmatprep.subr.bf16.mxu0 %v754
    %963 = vmatpush1.bf16.msra.mxu0 %v753
    %964 = vmatprep.subr.bf16.mxu0 %v760
    %965 = vmatpush1.bf16.msra.mxu0 %v759
    %966 = vmatprep.subr.bf16.mxu0 0
    %967 = vmatpush1.bf16.msra.mxu0 0
    %968 = vmatprep.subr.bf16.mxu0 0
    %969 = vmatpush1.bf16.msra.mxu0 0
    %970 = vmatprep.subr.bf16.mxu0 0
    %971 = vmatpush1.bf16.msra.mxu0 0
    %972 = vmatprep.subr.bf16.mxu0 0
    %973 = vmatpush1.bf16.msra.mxu0 0
    %974 = vmatprep.subr.bf16.mxu0 0
    %975 = vmatpush1.bf16.msra.mxu0 0
    %976 = vmatprep.subr.bf16.mxu0 0
    %977 = vmatpush1.bf16.msra.mxu0 0
    %978 = vmatprep.subr.bf16.mxu0 0
    %979 = vmatpush1.bf16.msra.mxu0 0
    %980 = vmatprep.subr.bf16.mxu0 0
    %981 = vmatpush1.bf16.msra.mxu0 0
    %982 = vmatprep.mubr.bf16.mxu0 0
    %983 = vmatmul.mubr.bf16.gmra.mrb[0].mxu0 %v44
    %v984 = vpop.f32.mrb[0].mxu0
    %v985 = vadd.f32 %v944, %v984
    %v986 = vpop.f32.mrb[0].mxu0
    %v987 = vadd.f32 %v946, %v986
    %v988 = vpop.f32.mrb[0].mxu0
    %v989 = vpop.f32.mrb[0].mxu0
    %990 = vdwg.mxu0
    %991 = vmatprep.subr.bf16.mxu0 %v624
    %992 = vmatpush1.bf16.msra.mxu0 %v623
    %993 = vmatprep.subr.bf16.mxu0 %v630
    %994 = vmatpush1.bf16.msra.mxu0 %v629
    %995 = vmatprep.subr.bf16.mxu0 %v636
    %996 = vmatpush1.bf16.msra.mxu0 %v635
    %997 = vmatprep.subr.bf16.mxu0 %v642
    %998 = vmatpush1.bf16.msra.mxu0 %v641
    %999 = vmatprep.subr.bf16.mxu0 %v648
    %1000 = vmatpush1.bf16.msra.mxu0 %v647
    %1001 = vmatprep.subr.bf16.mxu0 %v654
    %1002 = vmatpush1.bf16.msra.mxu0 %v653
    %1003 = vmatprep.subr.bf16.mxu0 %v660
    %1004 = vmatpush1.bf16.msra.mxu0 %v659
    %1005 = vmatprep.subr.bf16.mxu0 %v666
    %1006 = vmatpush1.bf16.msra.mxu0 %v665
    %1007 = vmatprep.subr.bf16.mxu0 %v672
    %1008 = vmatpush1.bf16.msra.mxu0 %v671
    %1009 = vmatprep.subr.bf16.mxu0 %v678
    %1010 = vmatpush1.bf16.msra.mxu0 %v677
    %1011 = vmatprep.subr.bf16.mxu0 %v684
    %1012 = vmatpush1.bf16.msra.mxu0 %v683
    %1013 = vmatprep.subr.bf16.mxu0 %v690
    %1014 = vmatpush1.bf16.msra.mxu0 %v689
    %1015 = vmatprep.subr.bf16.mxu0 %v696
    %1016 = vmatpush1.bf16.msra.mxu0 %v695
    %1017 = vmatprep.subr.bf16.mxu0 %v702
    %1018 = vmatpush1.bf16.msra.mxu0 %v701
    %1019 = vmatprep.subr.bf16.mxu0 %v708
    %1020 = vmatpush1.bf16.msra.mxu0 %v707
    %1021 = vmatprep.subr.bf16.mxu0 %v714
    %1022 = vmatpush1.bf16.msra.mxu0 %v713
    %1023 = vmatprep.mubr.bf16.mxu0 %v41
    %1024 = vmatmul.mubr.bf16.gmra.mrb[0].mxu0 %v41
    %v1025 = vpop.f32.mrb[0].mxu0
    %v1026 = vadd.f32 0.0, %v1025
    %v1027 = vpop.f32.mrb[0].mxu0
    %v1028 = vadd.f32 0.0, %v1027
    %v1029 = vpop.f32.mrb[0].mxu0
    %v1030 = vpop.f32.mrb[0].mxu0
    %1031 = vdwg.mxu0
    %1032 = vmatprep.subr.bf16.mxu0 %v720
    %1033 = vmatpush1.bf16.msra.mxu0 %v719
    %1034 = vmatprep.subr.bf16.mxu0 %v726
    %1035 = vmatpush1.bf16.msra.mxu0 %v725
    %1036 = vmatprep.subr.bf16.mxu0 %v732
    %1037 = vmatpush1.bf16.msra.mxu0 %v731
    %1038 = vmatprep.subr.bf16.mxu0 %v738
    %1039 = vmatpush1.bf16.msra.mxu0 %v737
    %1040 = vmatprep.subr.bf16.mxu0 %v744
    %1041 = vmatpush1.bf16.msra.mxu0 %v743
    %1042 = vmatprep.subr.bf16.mxu0 %v750
    %1043 = vmatpush1.bf16.msra.mxu0 %v749
    %1044 = vmatprep.subr.bf16.mxu0 %v756
    %1045 = vmatpush1.bf16.msra.mxu0 %v755
    %1046 = vmatprep.subr.bf16.mxu0 %v762
    %1047 = vmatpush1.bf16.msra.mxu0 %v761
    %1048 = vmatprep.subr.bf16.mxu0 0
    %1049 = vmatpush1.bf16.msra.mxu0 0
    %1050 = vmatprep.subr.bf16.mxu0 0
    %1051 = vmatpush1.bf16.msra.mxu0 0
    %1052 = vmatprep.subr.bf16.mxu0 0
    %1053 = vmatpush1.bf16.msra.mxu0 0
    %1054 = vmatprep.subr.bf16.mxu0 0
    %1055 = vmatpush1.bf16.msra.mxu0 0
    %1056 = vmatprep.subr.bf16.mxu0 0
    %1057 = vmatpush1.bf16.msra.mxu0 0
    %1058 = vmatprep.subr.bf16.mxu0 0
    %1059 = vmatpush1.bf16.msra.mxu0 0
    %1060 = vmatprep.subr.bf16.mxu0 0
    %1061 = vmatpush1.bf16.msra.mxu0 0
    %1062 = vmatprep.subr.bf16.mxu0 0
    %1063 = vmatpush1.bf16.msra.mxu0 0
    %1064 = vmatprep.mubr.bf16.mxu0 0
    %1065 = vmatmul.mubr.bf16.gmra.mrb[0].mxu0 %v44
    %v1066 = vpop.f32.mrb[0].mxu0
    %v1067 = vadd.f32 %v1026, %v1066
    %v1068 = vpop.f32.mrb[0].mxu0
    %v1069 = vadd.f32 %v1028, %v1068
    %v1070 = vpop.f32.mrb[0].mxu0
    %v1071 = vpop.f32.mrb[0].mxu0
    %1072 = vdwg.mxu0
    %1073 = vmatprep.subr.bf16.mxu0 %v626
    %1074 = vmatpush1.bf16.msra.mxu0 %v625
    %1075 = vmatprep.subr.bf16.mxu0 %v632
    %1076 = vmatpush1.bf16.msra.mxu0 %v631
    %1077 = vmatprep.subr.bf16.mxu0 %v638
    %1078 = vmatpush1.bf16.msra.mxu0 %v637
    %1079 = vmatprep.subr.bf16.mxu0 %v644
    %1080 = vmatpush1.bf16.msra.mxu0 %v643
    %1081 = vmatprep.subr.bf16.mxu0 %v650
    %1082 = vmatpush1.bf16.msra.mxu0 %v649
    %1083 = vmatprep.subr.bf16.mxu0 %v656
    %1084 = vmatpush1.bf16.msra.mxu0 %v655
    %1085 = vmatprep.subr.bf16.mxu0 %v662
    %1086 = vmatpush1.bf16.msra.mxu0 %v661
    %1087 = vmatprep.subr.bf16.mxu0 %v668
    %1088 = vmatpush1.bf16.msra.mxu0 %v667
    %1089 = vmatprep.subr.bf16.mxu0 %v674
    %1090 = vmatpush1.bf16.msra.mxu0 %v673
    %1091 = vmatprep.subr.bf16.mxu0 %v680
    %1092 = vmatpush1.bf16.msra.mxu0 %v679
    %1093 = vmatprep.subr.bf16.mxu0 %v686
    %1094 = vmatpush1.bf16.msra.mxu0 %v685
    %1095 = vmatprep.subr.bf16.mxu0 %v692
    %1096 = vmatpush1.bf16.msra.mxu0 %v691
    %1097 = vmatprep.subr.bf16.mxu0 %v698
    %1098 = vmatpush1.bf16.msra.mxu0 %v697
    %1099 = vmatprep.subr.bf16.mxu0 %v704
    %1100 = vmatpush1.bf16.msra.mxu0 %v703
    %1101 = vmatprep.subr.bf16.mxu0 %v710
    %1102 = vmatpush1.bf16.msra.mxu0 %v709
    %1103 = vmatprep.subr.bf16.mxu0 %v716
    %1104 = vmatpush1.bf16.msra.mxu0 %v715
    %1105 = vmatprep.mubr.bf16.mxu0 %v41
    %1106 = vmatmul.mubr.bf16.gmra.mrb[0].mxu0 %v41
    %v1107 = vpop.f32.mrb[0].mxu0
    %v1108 = vadd.f32 0.0, %v1107
    %v1109 = vpop.f32.mrb[0].mxu0
    %v1110 = vadd.f32 0.0, %v1109
    %v1111 = vpop.f32.mrb[0].mxu0
    %v1112 = vpop.f32.mrb[0].mxu0
    %1113 = vdwg.mxu0
    %1114 = vmatprep.subr.bf16.mxu0 %v722
    %1115 = vmatpush1.bf16.msra.mxu0 %v721
    %1116 = vmatprep.subr.bf16.mxu0 %v728
    %1117 = vmatpush1.bf16.msra.mxu0 %v727
    %1118 = vmatprep.subr.bf16.mxu0 %v734
    %1119 = vmatpush1.bf16.msra.mxu0 %v733
    %1120 = vmatprep.subr.bf16.mxu0 %v740
    %1121 = vmatpush1.bf16.msra.mxu0 %v739
    %1122 = vmatprep.subr.bf16.mxu0 %v746
    %1123 = vmatpush1.bf16.msra.mxu0 %v745
    %1124 = vmatprep.subr.bf16.mxu0 %v752
    %1125 = vmatpush1.bf16.msra.mxu0 %v751
    %1126 = vmatprep.subr.bf16.mxu0 %v758
    %1127 = vmatpush1.bf16.msra.mxu0 %v757
    %1128 = vmatprep.subr.bf16.mxu0 %v764
    %1129 = vmatpush1.bf16.msra.mxu0 %v763
    %1130 = vmatprep.subr.bf16.mxu0 0
    %1131 = vmatpush1.bf16.msra.mxu0 0
    %1132 = vmatprep.subr.bf16.mxu0 0
    %1133 = vmatpush1.bf16.msra.mxu0 0
    %1134 = vmatprep.subr.bf16.mxu0 0
    %1135 = vmatpush1.bf16.msra.mxu0 0
    %1136 = vmatprep.subr.bf16.mxu0 0
    %1137 = vmatpush1.bf16.msra.mxu0 0
    %1138 = vmatprep.subr.bf16.mxu0 0
    %1139 = vmatpush1.bf16.msra.mxu0 0
    %1140 = vmatprep.subr.bf16.mxu0 0
    %1141 = vmatpush1.bf16.msra.mxu0 0
    %1142 = vmatprep.subr.bf16.mxu0 0
    %1143 = vmatpush1.bf16.msra.mxu0 0
    %1144 = vmatprep.subr.bf16.mxu0 0
    %1145 = vmatpush1.bf16.msra.mxu0 0
    %1146 = vmatprep.mubr.bf16.mxu0 0
    %1147 = vmatmul.mubr.bf16.gmra.mrb[0].mxu0 %v44
    %v1148 = vpop.f32.mrb[0].mxu0
    %v1149 = vadd.f32 %v1108, %v1148
    %v1150 = vpop.f32.mrb[0].mxu0
    %v1151 = vadd.f32 %v1110, %v1150
    %v1152 = vpop.f32.mrb[0].mxu0
    %v1153 = vpop.f32.mrb[0].mxu0
    %1154 = vdwg.mxu0
    %vm1155 = vcmp.eq.s32.totalorder %v40, 0
    %v1156 = vsel %vm1155, 1, 0
    %v1157 = vcvt.s32.f32 %v1156
    %v1158 = vld [vmem:[%s3] sm:$0x1]
    %v1159 = vlaneseq
    %v1160 = vshrl.u32 %v1159, 7
    %v1161 = vsub.s32 0, %v1160
    %v1162 = vrot.slane %v1158, %v1161
    %v1163 = vadd.f32 %v985, %v1162
    %1165 = vset.pattern.permute.xlu0 0
    %1166 = vperm.xlu0 %1165, %v1157
    %v1167 = vpop.permute.xlu0 %1166
    %v1169 = vmul.f32 %v1167, %v1163
    %v1170 = vadd.f32 %v1169, 0.0
    %vm1171 = vcmp.eq.s32.totalorder %v40, 1
    %v1172 = vsel %vm1171, 1, 0
    %v1173 = vcvt.s32.f32 %v1172
    %v1174 = vld [vmem:[%s3 + $0x1] sm:$0x1]
    %v1175 = vlaneseq
    %v1176 = vshrl.u32 %v1175, 7
    %v1177 = vsub.s32 0, %v1176
    %v1178 = vrot.slane %v1174, %v1177
    %v1179 = vadd.f32 %v987, %v1178
    %1181 = vset.pattern.permute.xlu0 0
    %1182 = vperm.xlu0 %1181, %v1173
    %v1183 = vpop.permute.xlu0 %1182
    %v1185 = vmul.f32 %v1183, %v1179
    %v1186 = vadd.f32 %v1170, %v1185
    %vm1187 = vcmp.eq.s32.totalorder %v40, 2
    %v1188 = vsel %vm1187, 1, 0
    %v1189 = vcvt.s32.f32 %v1188
    %v1190 = vld [vmem:[%s3 + $0x2] sm:$0x1]
    %v1191 = vlaneseq
    %v1192 = vshrl.u32 %v1191, 7
    %v1193 = vsub.s32 0, %v1192
    %v1194 = vrot.slane %v1190, %v1193
    %v1195 = vadd.f32 %v1067, %v1194
    %1197 = vset.pattern.permute.xlu0 0
    %1198 = vperm.xlu0 %1197, %v1189
    %v1199 = vpop.permute.xlu0 %1198
    %v1201 = vmul.f32 %v1199, %v1195
    %v1202 = vadd.f32 %v1186, %v1201
    %vm1203 = vcmp.eq.s32.totalorder %v40, 3
    %v1204 = vsel %vm1203, 1, 0
    %v1205 = vcvt.s32.f32 %v1204
    %v1206 = vld [vmem:[%s3 + $0x3] sm:$0x1]
    %v1207 = vlaneseq
    %v1208 = vshrl.u32 %v1207, 7
    %v1209 = vsub.s32 0, %v1208
    %v1210 = vrot.slane %v1206, %v1209
    %v1211 = vadd.f32 %v1069, %v1210
    %1213 = vset.pattern.permute.xlu0 0
    %1214 = vperm.xlu0 %1213, %v1205
    %v1215 = vpop.permute.xlu0 %1214
    %v1217 = vmul.f32 %v1215, %v1211
    %v1218 = vadd.f32 %v1202, %v1217
    %vm1219 = vcmp.eq.s32.totalorder %v40, 4
    %v1220 = vsel %vm1219, 1, 0
    %v1221 = vcvt.s32.f32 %v1220
    %v1222 = vld [vmem:[%s3 + $0x4] sm:$0x1]
    %v1223 = vlaneseq
    %v1224 = vshrl.u32 %v1223, 7
    %v1225 = vsub.s32 0, %v1224
    %v1226 = vrot.slane %v1222, %v1225
    %v1227 = vadd.f32 %v1149, %v1226
    %1229 = vset.pattern.permute.xlu0 0
    %1230 = vperm.xlu0 %1229, %v1221
    %v1231 = vpop.permute.xlu0 %1230
    %v1233 = vmul.f32 %v1231, %v1227
    %v1234 = vadd.f32 %v1218, %v1233
    %vm1235 = vcmp.eq.s32.totalorder %v40, 5
    %v1236 = vsel %vm1235, 1, 0
    %v1237 = vcvt.s32.f32 %v1236
    %v1238 = vld [vmem:[%s3 + $0x5] sm:$0x1]
    %v1239 = vlaneseq
    %v1240 = vshrl.u32 %v1239, 7
    %v1241 = vsub.s32 0, %v1240
    %v1242 = vrot.slane %v1238, %v1241
    %v1243 = vadd.f32 %v1151, %v1242
    %1245 = vset.pattern.permute.xlu0 0
    %1246 = vperm.xlu0 %1245, %v1237
    %v1247 = vpop.permute.xlu0 %1246
    %v1249 = vmul.f32 %v1247, %v1243
    %v1250 = vadd.f32 %v1234, %v1249
    %1251 = vadd.xlane.f32.xlu0 %v1250
    %v1252 = vpop.xlane.xlu0 %1251
    %v1253 = vrcp.pop 128.0
    %v1254 = vmul.f32 %v1252, %v1253
    %v1255 = vsub.f32 %v1250, %v1254
    %v1256 = vmul.f32 %v1255, %v1255
    %1257 = vadd.xlane.f32.xlu0 %v1256
    %v1258 = vpop.xlane.xlu0 %1257
    %v1259 = vmul.f32 %v1258, %v1253
    %v1260 = vadd.f32 %v1259, 1e-05
    %v1261 = vrsqrt.pop %v1260
    %v1262 = vmul.f32 %v1255, %v1261
    %v1263 = vld [vmem:[%s4] sm:$0x1]
    %v1265 = vlaneseq
    %v1266 = vshrl.u32 %v1265, 7
    %v1267 = vsub.s32 0, %v1266
    %v1268 = vrot.slane %v1263, %v1267
    %v1270 = vmul.f32 %v1262, %v1268
    %v1271 = vld [vmem:[%s5] sm:$0x1]
    %v1273 = vlaneseq
    %v1274 = vshrl.u32 %v1273, 7
    %v1275 = vsub.s32 0, %v1274
    %v1276 = vrot.slane %v1271, %v1275
    %v1278 = vadd.f32 %v1270, %v1276
    %1279 = vst [vmem:[#allocation5] sm:$0xff] %v1278
    // Predicated region
    $region30: #{tpu_custom_call.1} parent=1 // pred_check
      _
    $region31: #{tpu_custom_call.1} parent=1 // pred_check_branch
      %1281 = sbr.rel (0) target = $region33
    $region32: #{tpu_custom_call.1} parent=1 // pred_region
      %s1283 = ssub.s32 128, 128
      %1284 = vsyncadd [#allocation4], %s1283
      %s1286 = sshll.u32 [#allocation5], 4
      %s1287 = int_to_ptr.vmem [resolvable:$true] %s1286
      %1289 = dma.vmem_to_hbm [thread:$0]  %s1287, 128, %s6, [#allocation4]
    $region33: #{tpu_custom_call.1} parent=1 // pred_fallthru
      _
    // Predicated region
    $region34: #{tpu_custom_call.1} parent=1 // pred_check
      _
    $region35: #{tpu_custom_call.1} parent=1 // pred_check_branch
      %1291 = sbr.rel (0) target = $region37
    $region36: #{tpu_custom_call.1} parent=1 // pred_region
      %1292 = dma.done [#allocation4], 128
    $region37: #{tpu_custom_call.1} parent=1 // pred_fallthru
      _
    %1293 = vsyncpa [#allocation3], 1
    %1294 = vsyncpa [#allocation4], 1

</llo_original>
